<compile_context>
chip_gen: v7x
topology: tpu7x:2x2x1
jax: 0.10.0
libtpu: 0.0.40
codegen_flags: <defaults>
</compile_context>

<pallas_src>
import functools

import jax
import jax.numpy as jnp
from jax.experimental import pallas as pl
from jax.experimental.pallas import tpu as pltpu


def _round_up(x, m):
    return ((x + m - 1) // m) * m


def _softplus(x):
    # numerically stable log(1 + exp(x)), identical to F.softplus
    return jnp.logaddexp(x, 0.0)


# ----------------------------- Pallas kernel --------------------------------

def _ensemble_kernel(xa_ref, w1_ref, w2_ref, w3_ref, bias12_ref, b3_ref,
                     bounds_ref, eps_ref, out_ref):
    xa = xa_ref[...].astype(jnp.bfloat16)                    # (B, IN_PAD)
    b12 = bias12_ref[...]                                    # (2, FG) f32

    # ---- stacked encoders for both models of this group (one matmul each) ----
    h = jnp.dot(xa, w1_ref[...], preferred_element_type=jnp.float32)
    h = jnp.maximum(h + b12[0:1, :], 0.0)                    # (B, FG)
    h = jnp.dot(h.astype(jnp.bfloat16), w2_ref[...],
                preferred_element_type=jnp.float32)
    h = jnp.maximum(h + b12[1:2, :], 0.0)                    # (B, FG)

    # ---- fused heads: [mu slab (OUT_G) | logstd slab (OUT_G)] ----
    o = jnp.dot(h.astype(jnp.bfloat16), w3_ref[...],
                preferred_element_type=jnp.float32) + b3_ref[...]   # (B, 2*OUT_G)

    half = out_ref.shape[-1]                                 # OUT_G (128-aligned)
    mu = o[:, :half]
    logstd = o[:, half:]

    # ---- softplus-based logstd clamp (same math as the PyTorch module) ----
    bounds = bounds_ref[...]                                 # (2, OUT_G)
    lmax = bounds[0:1, :]
    lmin = bounds[1:2, :]
    logstd = lmax - _softplus(lmax - logstd)
    logstd = lmin + _softplus(logstd - lmin)

    # ---- reparameterized (rsample) predictions; residual added in wrapper ----
    out_ref[...] = mu + jnp.exp(logstd) * eps_ref[...]


# ------------------------------ wrapper --------------------------------------

@jax.jit
def ensemble_forward(x, action, packed, eps_state, eps_reward, indices=None):
    """Forward pass of the probabilistic ensemble dynamics model.

    Returns (observations, rewards) with shapes (B, M, obs) and (B, M, 1),
    or gathered (B, obs) / (B, 1) if `indices` is given (plain-JAX glue).
    """
    B, obs_size = x.shape
    act_size = action.shape[1]
    G, in_pad, fg = packed["w1"].shape
    out_g = packed["bounds"].shape[2]
    M = 2 * G
    Bp = _round_up(B, 8)

    # lane-padded input slab [x | action | 0...]
    xa = jnp.zeros((Bp, in_pad), jnp.float32)
    xa = xa.at[:B, :obs_size].set(x)
    xa = xa.at[:B, obs_size:obs_size + act_size].set(action)

    # group-major reparameterization-noise slab, lane-padded to OUT_G per group
    es = eps_state.reshape(B, G, 2 * obs_size)
    er = eps_reward.reshape(B, G, 2)
    eps = jnp.zeros((Bp, G, out_g), jnp.float32)
    eps = eps.at[:B, :, :2 * obs_size].set(es)
    eps = eps.at[:B, :, 2 * obs_size:2 * obs_size + 2].set(er)
    eps = eps.reshape(Bp, G * out_g)

    inputs = [xa, packed["w1"], packed["w2"], packed["w3"],
              packed["bias12"], packed["b3"], packed["bounds"], eps]

    out = pl.pallas_call(
        _ensemble_kernel,
        out_shape=jax.ShapeDtypeStruct((Bp, G * out_g), jnp.float32),
        grid_spec=pltpu.PrefetchScalarGridSpec(
            num_scalar_prefetch=0,
            grid=(G,),
            in_specs=[
                pl.BlockSpec((Bp, in_pad), lambda g: (0, 0)),              # xa
                pl.BlockSpec((None, in_pad, fg), lambda g: (g, 0, 0)),     # w1
                pl.BlockSpec((None, fg, fg), lambda g: (g, 0, 0)),         # w2 (diag block)
                pl.BlockSpec((None, fg, 2 * out_g), lambda g: (g, 0, 0)),  # w3
                pl.BlockSpec((None, 2, fg), lambda g: (g, 0, 0)),          # bias12
                pl.BlockSpec((None, 1, 2 * out_g), lambda g: (g, 0, 0)),   # b3
                pl.BlockSpec((None, 2, out_g), lambda g: (g, 0, 0)),       # bounds
                pl.BlockSpec((Bp, out_g), lambda g: (0, g)),               # eps
            ],
            out_specs=pl.BlockSpec((Bp, out_g), lambda g: (0, g)),
        ),
        compiler_params=pltpu.CompilerParams(
            dimension_semantics=("parallel",),
        ),
    )(*inputs)

    # untangle the lane-dense slab: no transpose needed (group/model-major cols)
    out = out[:B].reshape(B, G, out_g)
    state_pred = out[:, :, :2 * obs_size].reshape(B, M, obs_size)
    reward_pred = out[:, :, 2 * obs_size:2 * obs_size + 2].reshape(B, M, 1)

    observations = state_pred + x[:, None, :]        # residual add in the wrapper
    rewards = reward_pred

    if indices is not None:
        observations = observations[jnp.arange(B), indices]
        rewards = rewards[jnp.arange(B), indices]
    return observations, rewards


# ----------------------- parameter packing (one-time) ------------------------

def pack_ensemble_params(params, obs_size):
    """Pack per-model weights into lane-aligned, group-major bf16 slabs."""
    ws1 = params["ws1"]                      # (M, in, H)
    M, in_size, H = ws1.shape
    assert M % 2 == 0, "ensemble size must be even for 2-model groups"
    G = M // 2
    fg = _round_up(4 * H, 128)               # group feature width
    in_pad = _round_up(in_size, 128)
    out_g = _round_up(2 * obs_size + 2, 128) # per-group head output width

    w1 = jnp.zeros((G, in_pad, fg), jnp.float32)
    w2 = jnp.zeros((G, fg, fg), jnp.float32)
    w3 = jnp.zeros((G, fg, 2 * out_g), jnp.float32)
    bias12 = jnp.zeros((G, 2, fg), jnp.float32)
    b3 = jnp.zeros((G, 1, 2 * out_g), jnp.float32)
    bounds = jnp.zeros((G, 2, out_g), jnp.float32)

    for g in range(G):
        for j in range(2):                   # model within the group
            m = 2 * g + j
            fs = (2 * j) * H                 # state-feature offset in the group
            fr = fs + H                      # reward-feature offset
            # layer 1
            w1 = w1.at[g, :in_size, fs:fs + H].set(params["ws1"][m])
            w1 = w1.at[g, :in_size, fr:fr + H].set(params["wr1"][m])
            bias12 = bias12.at[g, 0, fs:fs + H].set(params["bs1"][m].reshape(H))
            bias12 = bias12.at[g, 0, fr:fr + H].set(params["br1"][m].reshape(H))
            # layer 2 (block-diagonal within the group)
            w2 = w2.at[g, fs:fs + H, fs:fs + H].set(params["ws2"][m])
            w2 = w2.at[g, fr:fr + H, fr:fr + H].set(params["wr2"][m])
            bias12 = bias12.at[g, 1, fs:fs + H].set(params["bs2"][m].reshape(H))
            bias12 = bias12.at[g, 1, fr:fr + H].set(params["br2"][m].reshape(H))
            # heads: cols [state_a | state_b | reward_a | reward_b | pad]
            cs = j * obs_size
            cr = 2 * obs_size + j
            w3 = w3.at[g, fs:fs + H, cs:cs + obs_size].set(params["wsm"][m])
            w3 = w3.at[g, fr:fr + H, cr:cr + 1].set(params["wrm"][m])
            w3 = w3.at[g, fs:fs + H, out_g + cs:out_g + cs + obs_size].set(params["wsl"][m])
            w3 = w3.at[g, fr:fr + H, out_g + cr:out_g + cr + 1].set(params["wrl"][m])
            b3 = b3.at[g, 0, cs:cs + obs_size].set(params["bsm"][m].reshape(obs_size))
            b3 = b3.at[g, 0, cr].set(params["brm"][m].reshape(()))
            b3 = b3.at[g, 0, out_g + cs:out_g + cs + obs_size].set(params["bsl"][m].reshape(obs_size))
            b3 = b3.at[g, 0, out_g + cr].set(params["brl"][m].reshape(()))
            bounds = bounds.at[g, 0, cs:cs + obs_size].set(params["smax"][m].reshape(obs_size))
            bounds = bounds.at[g, 0, cr].set(params["rmax"][m].reshape(()))
            bounds = bounds.at[g, 1, cs:cs + obs_size].set(params["smin"][m].reshape(obs_size))
            bounds = bounds.at[g, 1, cr].set(params["rmin"][m].reshape(()))

    return {
        "w1": w1.astype(jnp.bfloat16),
        "w2": w2.astype(jnp.bfloat16),
        "w3": w3.astype(jnp.bfloat16),
        "bias12": bias12, "b3": b3, "bounds": bounds,
    }


# ------------------------- deterministic parameter init ----------------------

def _spectral_normalize(w):
    # TODO(synk): PyTorch spectral_norm uses a 1-step power-iteration estimate;
    # here the exact largest singular value is used (init-time idealization).
    return w / jnp.linalg.norm(w, ord=2)


def _linear_init(key, fan_in, fan_out):
    kw, kb = jax.random.split(key)
    bound = 1.0 / jnp.sqrt(jnp.float32(fan_in))
    w = jax.random.uniform(kw, (fan_in, fan_out), jnp.float32, -bound, bound)
    b = jax.random.uniform(kb, (fan_out,), jnp.float32, -bound, bound)
    return w, b


def init_ensemble_params(key, n_models, obs_size, action_size, hidden):
    in_size = obs_size + action_size
    stacks = {k: [] for k in [
        "ws1", "bs1", "ws2", "bs2", "wr1", "br1", "wr2", "br2",
        "wsm", "bsm", "wsl", "bsl", "wrm", "brm", "wrl", "brl",
        "smax", "smin", "rmax", "rmin",
    ]}
    for m in range(n_models):
        mkey = jax.random.fold_in(key, m)
        ks = jax.random.split(mkey, 8)
        ws1, bs1 = _linear_init(ks[0], in_size, hidden)
        ws2, bs2 = _linear_init(ks[1], hidden, hidden)
        wr1, br1 = _linear_init(ks[2], in_size, hidden)
        wr2, br2 = _linear_init(ks[3], hidden, hidden)
        wsm, bsm = _linear_init(ks[4], hidden, obs_size)
        wsl, bsl = _linear_init(ks[5], hidden, obs_size)
        wrm, brm = _linear_init(ks[6], hidden, 1)
        wrl, brl = _linear_init(ks[7], hidden, 1)

        stacks["ws1"].append(_spectral_normalize(ws1)); stacks["bs1"].append(bs1[None])
        stacks["ws2"].append(_spectral_normalize(ws2)); stacks["bs2"].append(bs2[None])
        stacks["wr1"].append(_spectral_normalize(wr1)); stacks["br1"].append(br1[None])
        stacks["wr2"].append(_spectral_normalize(wr2)); stacks["br2"].append(br2[None])
        stacks["wsm"].append(_spectral_normalize(wsm)); stacks["bsm"].append(bsm[None])
        stacks["wsl"].append(wsl);                      stacks["bsl"].append(bsl[None])
        stacks["wrm"].append(_spectral_normalize(wrm)); stacks["brm"].append(brm[None])
        stacks["wrl"].append(wrl);                      stacks["brl"].append(brl[None])
        stacks["smax"].append(jnp.full((1, obs_size), 2.0, jnp.float32))
        stacks["smin"].append(jnp.full((1, obs_size), -10.0, jnp.float32))
        stacks["rmax"].append(jnp.full((1, 1), 2.0, jnp.float32))
        stacks["rmin"].append(jnp.full((1, 1), -10.0, jnp.float32))
    return {k: jnp.stack(v, axis=0) for k, v in stacks.items()}


# ------------------------------ reference (pure JAX) --------------------------
# Mirrors the kernel's numerics: bf16 weights / activations into each dot,
# f32 accumulation, f32 elementwise math.

def reference_forward(x, action, params, eps_state, eps_reward):
    def bdot(a, w):
        return jnp.dot(a.astype(jnp.bfloat16), w.astype(jnp.bfloat16),
                       preferred_element_type=jnp.float32)

    xa = jnp.concatenate([x, action], axis=-1)
    obs_list, rew_list = [], []
    M = params["ws1"].shape[0]
    for m in range(M):
        p = {k: v[m] for k, v in params.items()}
        h = jnp.maximum(bdot(xa, p["ws1"]) + p["bs1"], 0.0)
        h = jnp.maximum(bdot(h, p["ws2"]) + p["bs2"], 0.0)
        g = jnp.maximum(bdot(xa, p["wr1"]) + p["br1"], 0.0)
        g = jnp.maximum(bdot(g, p["wr2"]) + p["br2"], 0.0)
        smu = bdot(h, p["wsm"]) + p["bsm"]
        sls = bdot(h, p["wsl"]) + p["bsl"]
        rmu = bdot(g, p["wrm"]) + p["brm"]
        rls = bdot(g, p["wrl"]) + p["brl"]
        sls = p["smax"] - jax.nn.softplus(p["smax"] - sls)
        sls = p["smin"] + jax.nn.softplus(sls - p["smin"])
        rls = p["rmax"] - jax.nn.softplus(p["rmax"] - rls)
        rls = p["rmin"] + jax.nn.softplus(rls - p["rmin"])
        obs_list.append(x + smu + jnp.exp(sls) * eps_state[:, m])
        rew_list.append(rmu + jnp.exp(rls) * eps_reward[:, m])
    return jnp.stack(obs_list, 1), jnp.stack(rew_list, 1)


# --------------------------------- main ---------------------------------------

if __name__ == "__main__":
    B = 8            # batch
    OBS = 16         # observation size
    ACT = 8          # action size
    HID = 32         # encoder hidden / feature size
    M = 4            # number of ensemble members

    key = jax.random.PRNGKey(0)
    k_param, k_x, k_a, k_es, k_er, k_idx = jax.random.split(key, 6)

    params = init_ensemble_params(k_param, M, OBS, ACT, HID)
    packed = pack_ensemble_params(params, OBS)

    x = jax.random.normal(k_x, (B, OBS), jnp.float32)
    action = jax.random.normal(k_a, (B, ACT), jnp.float32)
    # reparameterization noise for Normal.rsample (one draw per model)
    eps_state = jax.random.normal(k_es, (B, M, OBS), jnp.float32)
    eps_reward = jax.random.normal(k_er, (B, M, 1), jnp.float32)

    observations, rewards = ensemble_forward(x, action, packed, eps_state, eps_reward)
    observations = jax.block_until_ready(observations)
    rewards = jax.block_until_ready(rewards)

    assert observations.shape == (B, M, OBS)
    assert rewards.shape == (B, M, 1)

    ref_obs, ref_rew = reference_forward(x, action, params, eps_state, eps_reward)
    assert jnp.allclose(observations, ref_obs, atol=1e-2, rtol=1e-2)
    assert jnp.allclose(rewards, ref_rew, atol=1e-2, rtol=1e-2)

    # indices path (plain-JAX gather glue on top of the kernel output)
    idx = jax.random.randint(k_idx, (B,), 0, M)
    part_obs, part_rew = ensemble_forward(
        x, action, packed, eps_state, eps_reward, indices=idx)
    part_obs = jax.block_until_ready(part_obs)
    assert part_obs.shape == (B, OBS) and part_rew.shape == (B, 1)
    assert jnp.allclose(part_obs, ref_obs[jnp.arange(B), idx], atol=1e-2, rtol=1e-2)
    assert jnp.allclose(part_rew, ref_rew[jnp.arange(B), idx], atol=1e-2, rtol=1e-2)

    # TODO(synk): compute_error / 'data' ensemble-variance path is not part of
    # forward()'s returned tuple; keep it in plain JAX if required.
    print("KERNEL_OK")
</pallas_src>

<mosaic_0001>
module attributes {stable_mosaic.version = 11 : i64} {
  func.func @_ensemble_kernel(%arg0: i32, %arg1: memref<8x128xf32, #tpu.memory_space<vmem>>, %arg2: memref<1x128x128xbf16, #tpu.memory_space<vmem>>, %arg3: memref<1x128x128xbf16, #tpu.memory_space<vmem>>, %arg4: memref<1x128x256xbf16, #tpu.memory_space<vmem>>, %arg5: memref<1x2x128xf32, #tpu.memory_space<vmem>>, %arg6: memref<1x1x256xf32, #tpu.memory_space<vmem>>, %arg7: memref<1x2x128xf32, #tpu.memory_space<vmem>>, %arg8: memref<8x128xf32, #tpu.memory_space<vmem>>, %arg9: memref<8x128xf32, #tpu.memory_space<vmem>>) attributes {dimension_semantics = [#tpu.dimension_semantics<parallel>], iteration_bounds = array<i64: 2>, scalar_prefetch = 0 : i64, scratch_operands = 0 : i64, tpu.core_type = #tpu.core_type<tc>, window_params = [{pipeline_mode = #tpu.pipeline_mode<synchronous>, transform_indices = @transform_0, window_bounds = array<i64: 8, 128>}, {transform_indices = @transform_1, window_bounds = array<i64: 1, 128, 128>}, {transform_indices = @transform_2, window_bounds = array<i64: 1, 128, 128>}, {transform_indices = @transform_3, window_bounds = array<i64: 1, 128, 256>}, {transform_indices = @transform_4, window_bounds = array<i64: 1, 2, 128>}, {transform_indices = @transform_5, window_bounds = array<i64: 1, 1, 256>}, {transform_indices = @transform_6, window_bounds = array<i64: 1, 2, 128>}, {transform_indices = @transform_7, window_bounds = array<i64: 8, 128>}, {transform_indices = @transform_8, window_bounds = array<i64: 8, 128>}]} {
    %c0 = arith.constant 0 : index
    %c0_0 = arith.constant 0 : index
    %0 = vector.load %arg1[%c0, %c0_0] : memref<8x128xf32, #tpu.memory_space<vmem>>, vector<8x128xf32>
    %1 = arith.truncf %0 : vector<8x128xf32> to vector<8x128xbf16>
    %c0_1 = arith.constant 0 : index
    %c0_2 = arith.constant 0 : index
    %c0_3 = arith.constant 0 : index
    %2 = vector.load %arg5[%c0_1, %c0_2, %c0_3] : memref<1x2x128xf32, #tpu.memory_space<vmem>>, vector<1x2x128xf32>
    %3 = vector.shape_cast %2 : vector<1x2x128xf32> to vector<2x128xf32>
    %c0_4 = arith.constant 0 : index
    %c0_5 = arith.constant 0 : index
    %c0_6 = arith.constant 0 : index
    %4 = vector.load %arg2[%c0_4, %c0_5, %c0_6] : memref<1x128x128xbf16, #tpu.memory_space<vmem>>, vector<1x128x128xbf16>
    %5 = vector.shape_cast %4 : vector<1x128x128xbf16> to vector<128x128xbf16>
    %cst = arith.constant dense<0.000000e+00> : vector<8x128xf32>
    %6 = tpu.matmul %1, %5, %cst {dimension_numbers = #tpu.dot_dimension_numbers<[1], [0], [0], [1], [0, 0, 1, 1], [], []>} : vector<8x128xbf16>, vector<128x128xbf16>, vector<8x128xf32> -> vector<8x128xf32>
    %7 = vector.extract_strided_slice %3 {offsets = [0, 0], sizes = [1, 128], strides = [1, 1]} : vector<2x128xf32> to vector<1x128xf32>
    %8 = vector.broadcast %7 : vector<1x128xf32> to vector<8x128xf32>
    %9 = arith.addf %6, %8 : vector<8x128xf32>
    %cst_7 = arith.constant 0.000000e+00 : f32
    %10 = vector.broadcast %cst_7 : f32 to vector<8x128xf32>
    %11 = arith.maximumf %9, %10 : vector<8x128xf32>
    %12 = arith.truncf %11 : vector<8x128xf32> to vector<8x128xbf16>
    %c0_8 = arith.constant 0 : index
    %c0_9 = arith.constant 0 : index
    %c0_10 = arith.constant 0 : index
    %13 = vector.load %arg3[%c0_8, %c0_9, %c0_10] : memref<1x128x128xbf16, #tpu.memory_space<vmem>>, vector<1x128x128xbf16>
    %14 = vector.shape_cast %13 : vector<1x128x128xbf16> to vector<128x128xbf16>
    %cst_11 = arith.constant dense<0.000000e+00> : vector<8x128xf32>
    %15 = tpu.matmul %12, %14, %cst_11 {dimension_numbers = #tpu.dot_dimension_numbers<[1], [0], [0], [1], [0, 0, 1, 1], [], []>} : vector<8x128xbf16>, vector<128x128xbf16>, vector<8x128xf32> -> vector<8x128xf32>
    %16 = vector.extract_strided_slice %3 {offsets = [1, 0], sizes = [1, 128], strides = [1, 1]} : vector<2x128xf32> to vector<1x128xf32>
    %17 = vector.broadcast %16 : vector<1x128xf32> to vector<8x128xf32>
    %18 = arith.addf %15, %17 : vector<8x128xf32>
    %cst_12 = arith.constant 0.000000e+00 : f32
    %19 = vector.broadcast %cst_12 : f32 to vector<8x128xf32>
    %20 = arith.maximumf %18, %19 : vector<8x128xf32>
    %21 = arith.truncf %20 : vector<8x128xf32> to vector<8x128xbf16>
    %c0_13 = arith.constant 0 : index
    %c0_14 = arith.constant 0 : index
    %c0_15 = arith.constant 0 : index
    %22 = vector.load %arg4[%c0_13, %c0_14, %c0_15] : memref<1x128x256xbf16, #tpu.memory_space<vmem>>, vector<1x128x256xbf16>
    %23 = vector.shape_cast %22 : vector<1x128x256xbf16> to vector<128x256xbf16>
    %cst_16 = arith.constant dense<0.000000e+00> : vector<8x256xf32>
    %24 = tpu.matmul %21, %23, %cst_16 {dimension_numbers = #tpu.dot_dimension_numbers<[1], [0], [0], [1], [0, 0, 1, 1], [], []>} : vector<8x128xbf16>, vector<128x256xbf16>, vector<8x256xf32> -> vector<8x256xf32>
    %c0_17 = arith.constant 0 : index
    %c0_18 = arith.constant 0 : index
    %c0_19 = arith.constant 0 : index
    %25 = vector.load %arg6[%c0_17, %c0_18, %c0_19] : memref<1x1x256xf32, #tpu.memory_space<vmem>>, vector<1x1x256xf32>
    %26 = vector.shape_cast %25 : vector<1x1x256xf32> to vector<1x256xf32>
    %27 = vector.broadcast %26 : vector<1x256xf32> to vector<8x256xf32>
    %28 = arith.addf %24, %27 : vector<8x256xf32>
    %29 = vector.extract_strided_slice %28 {offsets = [0, 0], sizes = [8, 128], strides = [1, 1]} : vector<8x256xf32> to vector<8x128xf32>
    %30 = vector.extract_strided_slice %28 {offsets = [0, 128], sizes = [8, 128], strides = [1, 1]} : vector<8x256xf32> to vector<8x128xf32>
    %c0_20 = arith.constant 0 : index
    %c0_21 = arith.constant 0 : index
    %c0_22 = arith.constant 0 : index
    %31 = vector.load %arg7[%c0_20, %c0_21, %c0_22] : memref<1x2x128xf32, #tpu.memory_space<vmem>>, vector<1x2x128xf32>
    %32 = vector.shape_cast %31 : vector<1x2x128xf32> to vector<2x128xf32>
    %33 = vector.extract_strided_slice %32 {offsets = [0, 0], sizes = [1, 128], strides = [1, 1]} : vector<2x128xf32> to vector<1x128xf32>
    %34 = vector.extract_strided_slice %32 {offsets = [1, 0], sizes = [1, 128], strides = [1, 1]} : vector<2x128xf32> to vector<1x128xf32>
    %35 = vector.broadcast %33 : vector<1x128xf32> to vector<8x128xf32>
    %36 = arith.subf %35, %30 : vector<8x128xf32>
    %cst_23 = arith.constant 0.000000e+00 : f32
    %37 = vector.broadcast %cst_23 : f32 to vector<8x128xf32>
    %38 = arith.maximumf %36, %37 : vector<8x128xf32>
    %39 = vector.broadcast %cst_23 : f32 to vector<8x128xf32>
    %40 = arith.subf %36, %39 : vector<8x128xf32>
    %41 = arith.cmpf one, %40, %40 : vector<8x128xf32>
    %42 = vector.broadcast %cst_23 : f32 to vector<8x128xf32>
    %43 = arith.addf %36, %42 : vector<8x128xf32>
    %44 = math.absf %40 : vector<8x128xf32>
    %cst_24 = arith.constant 0.000000e+00 : f32
    %45 = vector.broadcast %cst_24 : f32 to vector<8x128xf32>
    %46 = arith.subf %45, %44 : vector<8x128xf32>
    %47 = math.exp %46 : vector<8x128xf32>
    %48 = math.log1p %47 : vector<8x128xf32>
    %49 = arith.addf %38, %48 : vector<8x128xf32>
    %50 = arith.select %41, %43, %49 : vector<8x128xi1>, vector<8x128xf32>
    %51 = vector.broadcast %33 : vector<1x128xf32> to vector<8x128xf32>
    %52 = arith.subf %51, %50 : vector<8x128xf32>
    %53 = vector.broadcast %34 : vector<1x128xf32> to vector<8x128xf32>
    %54 = arith.subf %52, %53 : vector<8x128xf32>
    %cst_25 = arith.constant 0.000000e+00 : f32
    %55 = vector.broadcast %cst_25 : f32 to vector<8x128xf32>
    %56 = arith.maximumf %54, %55 : vector<8x128xf32>
    %57 = vector.broadcast %cst_25 : f32 to vector<8x128xf32>
    %58 = arith.subf %54, %57 : vector<8x128xf32>
    %59 = arith.cmpf one, %58, %58 : vector<8x128xf32>
    %60 = vector.broadcast %cst_25 : f32 to vector<8x128xf32>
    %61 = arith.addf %54, %60 : vector<8x128xf32>
    %62 = math.absf %58 : vector<8x128xf32>
    %cst_26 = arith.constant 0.000000e+00 : f32
    %63 = vector.broadcast %cst_26 : f32 to vector<8x128xf32>
    %64 = arith.subf %63, %62 : vector<8x128xf32>
    %65 = math.exp %64 : vector<8x128xf32>
    %66 = math.log1p %65 : vector<8x128xf32>
    %67 = arith.addf %56, %66 : vector<8x128xf32>
    %68 = arith.select %59, %61, %67 : vector<8x128xi1>, vector<8x128xf32>
    %69 = vector.broadcast %34 : vector<1x128xf32> to vector<8x128xf32>
    %70 = arith.addf %69, %68 : vector<8x128xf32>
    %71 = math.exp %70 : vector<8x128xf32>
    %c0_27 = arith.constant 0 : index
    %c0_28 = arith.constant 0 : index
    %72 = vector.load %arg8[%c0_27, %c0_28] : memref<8x128xf32, #tpu.memory_space<vmem>>, vector<8x128xf32>
    %73 = arith.mulf %71, %72 : vector<8x128xf32>
    %74 = arith.addf %29, %73 : vector<8x128xf32>
    %c0_29 = arith.constant 0 : index
    %c0_30 = arith.constant 0 : index
    %75 = vector.load %arg9[%c0_29, %c0_30] : memref<8x128xf32, #tpu.memory_space<vmem>>, vector<8x128xf32>
    tpu.vector_store %arg9[%c0_29, %c0_30], %74 {strides = array<i32>} : memref<8x128xf32, #tpu.memory_space<vmem>>, vector<8x128xf32>,
    return
  }
  func.func @transform_0(%arg0: i32) -> (i32, i32) {
    %c0_i32 = arith.constant 0 : i32
    %c0_i32_0 = arith.constant 0 : i32
    %c0_i32_1 = arith.constant 0 : i32
    return %c0_i32, %c0_i32_0 : i32, i32
  }
  func.func @transform_1(%arg0: i32) -> (i32, i32, i32) {
    %c0_i32 = arith.constant 0 : i32
    %c0_i32_0 = arith.constant 0 : i32
    %c0_i32_1 = arith.constant 0 : i32
    return %arg0, %c0_i32, %c0_i32_0 : i32, i32, i32
  }
  func.func @transform_2(%arg0: i32) -> (i32, i32, i32) {
    %c0_i32 = arith.constant 0 : i32
    %c0_i32_0 = arith.constant 0 : i32
    %c0_i32_1 = arith.constant 0 : i32
    return %arg0, %c0_i32, %c0_i32_0 : i32, i32, i32
  }
  func.func @transform_3(%arg0: i32) -> (i32, i32, i32) {
    %c0_i32 = arith.constant 0 : i32
    %c0_i32_0 = arith.constant 0 : i32
    %c0_i32_1 = arith.constant 0 : i32
    return %arg0, %c0_i32, %c0_i32_0 : i32, i32, i32
  }
  func.func @transform_4(%arg0: i32) -> (i32, i32, i32) {
    %c0_i32 = arith.constant 0 : i32
    %c0_i32_0 = arith.constant 0 : i32
    %c0_i32_1 = arith.constant 0 : i32
    return %arg0, %c0_i32, %c0_i32_0 : i32, i32, i32
  }
  func.func @transform_5(%arg0: i32) -> (i32, i32, i32) {
    %c0_i32 = arith.constant 0 : i32
    %c0_i32_0 = arith.constant 0 : i32
    %c0_i32_1 = arith.constant 0 : i32
    return %arg0, %c0_i32, %c0_i32_0 : i32, i32, i32
  }
  func.func @transform_6(%arg0: i32) -> (i32, i32, i32) {
    %c0_i32 = arith.constant 0 : i32
    %c0_i32_0 = arith.constant 0 : i32
    %c0_i32_1 = arith.constant 0 : i32
    return %arg0, %c0_i32, %c0_i32_0 : i32, i32, i32
  }
  func.func @transform_7(%arg0: i32) -> (i32, i32) {
    %c0_i32 = arith.constant 0 : i32
    %c0_i32_0 = arith.constant 0 : i32
    return %c0_i32, %arg0 : i32, i32
  }
  func.func @transform_8(%arg0: i32) -> (i32, i32) {
    %c0_i32 = arith.constant 0 : i32
    %c0_i32_0 = arith.constant 0 : i32
    return %c0_i32, %arg0 : i32, i32
  }
}

</mosaic_0001>

<llo_original>
// kernel: ensemble_forward.1
$region0: #{ensemble_forward.1}
  #allocation0 [shape = 'u32[]', space=smem, size = 0x4, offset = 0x4, fixed_abs, tag = 'smem constant byte address 0x4 - core index']
  #allocation1 [shape = 'u32[144,128]{1,0:T(1,128)}', space=vmem, size = 0x12000, scoped, tag = 'internal scratch']
  %s0 = inlined_call_operand.vmem [shape: f32[8,128], index: 0, kind: input, shape index: {}]
  %s1 = inlined_call_operand.hbm [shape: bf16[2,128,128], index: 1, kind: input, shape index: {}]
  %s2 = inlined_call_operand.hbm [shape: bf16[2,128,128], index: 2, kind: input, shape index: {}]
  %s3 = inlined_call_operand.vmem [shape: bf16[2,128,256], index: 3, kind: input, shape index: {}]
  %s4 = inlined_call_operand.vmem [shape: f32[2,2,128], index: 4, kind: input, shape index: {}]
  %s5 = inlined_call_operand.vmem [shape: f32[2,1,256], index: 5, kind: input, shape index: {}]
  %s6 = inlined_call_operand.vmem [shape: f32[2,2,128], index: 6, kind: input, shape index: {}]
  %s7 = inlined_call_operand.vmem [shape: f32[8,256], index: 7, kind: input, shape index: {}]
  %s8 = inlined_call_operand.vmem [shape: f32[8,256], index: 8, kind: output, shape index: {}]
  %s9 = sld [smem:[#allocation0]]
  $region73: #{ensemble_forward.1} parent=0
    _
  %s11 = ssub.s32 1, %s9
  %s12 = scalar_select 0, %s11, %s9
  $region1: #{ensemble_forward.1} parent=0
    #allocation2 [shape = 'u8[65536]{0}', space=vmem, size = 0x10000, scoped, tag = 'input window, operand 1']
    #allocation3 [shape = 's32[2]{0}', space=sflag, size = 0x8, scoped, tag = 'scoped memory for ensemble_forward.1']
    #allocation4 [shape = 'u8[65536]{0}', space=vmem, size = 0x10000, scoped, tag = 'input window, operand 2']
    #allocation5 [shape = 's32[2]{0}', space=sflag, size = 0x8, scoped, tag = 'scoped memory for ensemble_forward.1']
    %13 = vsyncpa [#allocation3], 0
    %s14 = scalar_lea.sflag [#allocation3], 1
    %15 = vsyncpa %s14, 0
    %16 = vsyncpa [#allocation5], 0
    %s17 = scalar_lea.sflag [#allocation5], 1
    %18 = vsyncpa %s17, 0
    loop: start=0, step=1, limit=4
    $region2: #{ensemble_forward.1} parent=1 // loop_pre_header
      _
    $region3: #{ensemble_forward.1} parent=1 // loop_header
      %s20 = sphi 0, %s24
      %p21 = scmp.ge.s32.totalorder %s20, 4
      %s28 = sphi 0, %s28
      %s30 = sphi 0, %s28
      %s31 = sphi 0, %s30
      %s45 = sphi 0, %s31
      %s51 = sphi 0, %s53
      %s54 = sphi 0, %s51
      %s55 = sphi 0, %s54
      %s71 = sphi 0, %s55
      %s77 = sphi 0, %s79
      %s80 = sphi 0, %s77
      %s81 = sphi 0, %s80
      %s97 = sphi 0, %s81
      %s103 = sphi 0, %s105
      %s106 = sphi 0, %s103
      %s107 = sphi 0, %s106
      %s123 = sphi 0, %s107
      %s129 = sphi 0, %s131
      %s132 = sphi 0, %s129
      %s133 = sphi 0, %s132
      %s149 = sphi 0, %s133
      %s155 = sphi 0, %s157
      %s158 = sphi 0, %s155
      %s159 = sphi 0, %s158
      %s175 = sphi 0, %s159
      %s181 = sphi 0, %s183
      %s184 = sphi 0, %s181
      %s185 = sphi 0, %s184
      %s201 = sphi 0, %s185
      %s207 = sphi 0, %s209
      %s210 = sphi 0, %s207
      %s211 = sphi 0, %s210
      %s227 = sphi 0, %s211
      %s233 = sphi 0, %s235
      %s236 = sphi 0, %s233
      %s237 = sphi 0, %s236
      %s253 = sphi 0, %s237
    $region4: #{ensemble_forward.1} parent=1 // loop_header_branch
      %23 = sbr.rel (%p21) target = $region8
    $region5: #{ensemble_forward.1} parent=1 // loop_body
      %s25 = ssub.s32 %s20, 1
      %s26 = ssub.s32 %s20, 2
      %s27 = sadd.s32 %s20, 1
      %s29 = sadd.s32 %s28, 1
      %p32 = scmp.eq.s32.totalorder %s20, 1
      %p33 = scmp.ne.s32.totalorder %s28, %s30
      %p34 = scmp.eq.s32.totalorder %s20, 0
      %p35 = por %p33, %p34
      %p36 = scmp.ne.s32.totalorder %s28, %s30
      %p37 = scmp.eq.s32.totalorder %s25, 1
      %p38 = por %p36, %p37
      %p39 = scmp.ne.s32.totalorder %s30, %s31
      %p40 = scmp.eq.s32.totalorder %s25, 0
      %p41 = por %p39, %p40
      %p42 = scmp.ne.s32.totalorder %s30, %s31
      %p43 = scmp.eq.s32.totalorder %s26, 1
      %p44 = por %p42, %p43
      %p46 = scmp.ne.s32.totalorder %s31, %s45
      %p47 = scmp.eq.s32.totalorder %s26, 0
      %p48 = por %p46, %p47
      %s49 = ssub.s32 %s20, %s27
      %p50 = scmp.eq.s32.totalorder %s49, 0
      %s52 = sadd.s32 %s51, 1
      %s53 = scalar_select %p50, %s51, %s52
      %p56 = pneg %p50
      %p57 = scmp.eq.s32.totalorder %s20, 1
      %p58 = por %p56, %p57
      %p59 = scmp.ne.s32.totalorder %s51, %s54
      %p60 = scmp.eq.s32.totalorder %s20, 0
      %p61 = por %p59, %p60
      %p62 = scmp.ne.s32.totalorder %s51, %s54
      %p63 = scmp.eq.s32.totalorder %s25, 1
      %p64 = por %p62, %p63
      %p65 = scmp.ne.s32.totalorder %s54, %s55
      %p66 = scmp.eq.s32.totalorder %s25, 0
      %p67 = por %p65, %p66
      %p68 = scmp.ne.s32.totalorder %s54, %s55
      %p69 = scmp.eq.s32.totalorder %s26, 1
      %p70 = por %p68, %p69
      %p72 = scmp.ne.s32.totalorder %s55, %s71
      %p73 = scmp.eq.s32.totalorder %s26, 0
      %p74 = por %p72, %p73
      %s75 = ssub.s32 %s20, %s27
      %p76 = scmp.eq.s32.totalorder %s75, 0
      %s78 = sadd.s32 %s77, 1
      %s79 = scalar_select %p76, %s77, %s78
      %p82 = pneg %p76
      %p83 = scmp.eq.s32.totalorder %s20, 1
      %p84 = por %p82, %p83
      %p85 = scmp.ne.s32.totalorder %s77, %s80
      %p86 = scmp.eq.s32.totalorder %s20, 0
      %p87 = por %p85, %p86
      %p88 = scmp.ne.s32.totalorder %s77, %s80
      %p89 = scmp.eq.s32.totalorder %s25, 1
      %p90 = por %p88, %p89
      %p91 = scmp.ne.s32.totalorder %s80, %s81
      %p92 = scmp.eq.s32.totalorder %s25, 0
      %p93 = por %p91, %p92
      %p94 = scmp.ne.s32.totalorder %s80, %s81
      %p95 = scmp.eq.s32.totalorder %s26, 1
      %p96 = por %p94, %p95
      %p98 = scmp.ne.s32.totalorder %s81, %s97
      %p99 = scmp.eq.s32.totalorder %s26, 0
      %p100 = por %p98, %p99
      %s101 = ssub.s32 %s20, %s27
      %p102 = scmp.eq.s32.totalorder %s101, 0
      %s104 = sadd.s32 %s103, 1
      %s105 = scalar_select %p102, %s103, %s104
      %p108 = pneg %p102
      %p109 = scmp.eq.s32.totalorder %s20, 1
      %p110 = por %p108, %p109
      %p111 = scmp.ne.s32.totalorder %s103, %s106
      %p112 = scmp.eq.s32.totalorder %s20, 0
      %p113 = por %p111, %p112
      %p114 = scmp.ne.s32.totalorder %s103, %s106
      %p115 = scmp.eq.s32.totalorder %s25, 1
      %p116 = por %p114, %p115
      %p117 = scmp.ne.s32.totalorder %s106, %s107
      %p118 = scmp.eq.s32.totalorder %s25, 0
      %p119 = por %p117, %p118
      %p120 = scmp.ne.s32.totalorder %s106, %s107
      %p121 = scmp.eq.s32.totalorder %s26, 1
      %p122 = por %p120, %p121
      %p124 = scmp.ne.s32.totalorder %s107, %s123
      %p125 = scmp.eq.s32.totalorder %s26, 0
      %p126 = por %p124, %p125
      %s127 = ssub.s32 %s20, %s27
      %p128 = scmp.eq.s32.totalorder %s127, 0
      %s130 = sadd.s32 %s129, 1
      %s131 = scalar_select %p128, %s129, %s130
      %p134 = pneg %p128
      %p135 = scmp.eq.s32.totalorder %s20, 1
      %p136 = por %p134, %p135
      %p137 = scmp.ne.s32.totalorder %s129, %s132
      %p138 = scmp.eq.s32.totalorder %s20, 0
      %p139 = por %p137, %p138
      %p140 = scmp.ne.s32.totalorder %s129, %s132
      %p141 = scmp.eq.s32.totalorder %s25, 1
      %p142 = por %p140, %p141
      %p143 = scmp.ne.s32.totalorder %s132, %s133
      %p144 = scmp.eq.s32.totalorder %s25, 0
      %p145 = por %p143, %p144
      %p146 = scmp.ne.s32.totalorder %s132, %s133
      %p147 = scmp.eq.s32.totalorder %s26, 1
      %p148 = por %p146, %p147
      %p150 = scmp.ne.s32.totalorder %s133, %s149
      %p151 = scmp.eq.s32.totalorder %s26, 0
      %p152 = por %p150, %p151
      %s153 = ssub.s32 %s20, %s27
      %p154 = scmp.eq.s32.totalorder %s153, 0
      %s156 = sadd.s32 %s155, 1
      %s157 = scalar_select %p154, %s155, %s156
      %p160 = pneg %p154
      %p161 = scmp.eq.s32.totalorder %s20, 1
      %p162 = por %p160, %p161
      %p163 = scmp.ne.s32.totalorder %s155, %s158
      %p164 = scmp.eq.s32.totalorder %s20, 0
      %p165 = por %p163, %p164
      %p166 = scmp.ne.s32.totalorder %s155, %s158
      %p167 = scmp.eq.s32.totalorder %s25, 1
      %p168 = por %p166, %p167
      %p169 = scmp.ne.s32.totalorder %s158, %s159
      %p170 = scmp.eq.s32.totalorder %s25, 0
      %p171 = por %p169, %p170
      %p172 = scmp.ne.s32.totalorder %s158, %s159
      %p173 = scmp.eq.s32.totalorder %s26, 1
      %p174 = por %p172, %p173
      %p176 = scmp.ne.s32.totalorder %s159, %s175
      %p177 = scmp.eq.s32.totalorder %s26, 0
      %p178 = por %p176, %p177
      %s179 = ssub.s32 %s20, %s27
      %p180 = scmp.eq.s32.totalorder %s179, 0
      %s182 = sadd.s32 %s181, 1
      %s183 = scalar_select %p180, %s181, %s182
      %p186 = pneg %p180
      %p187 = scmp.eq.s32.totalorder %s20, 1
      %p188 = por %p186, %p187
      %p189 = scmp.ne.s32.totalorder %s181, %s184
      %p190 = scmp.eq.s32.totalorder %s20, 0
      %p191 = por %p189, %p190
      %p192 = scmp.ne.s32.totalorder %s181, %s184
      %p193 = scmp.eq.s32.totalorder %s25, 1
      %p194 = por %p192, %p193
      %p195 = scmp.ne.s32.totalorder %s184, %s185
      %p196 = scmp.eq.s32.totalorder %s25, 0
      %p197 = por %p195, %p196
      %p198 = scmp.ne.s32.totalorder %s184, %s185
      %p199 = scmp.eq.s32.totalorder %s26, 1
      %p200 = por %p198, %p199
      %p202 = scmp.ne.s32.totalorder %s185, %s201
      %p203 = scmp.eq.s32.totalorder %s26, 0
      %p204 = por %p202, %p203
      %s205 = ssub.s32 %s20, %s27
      %p206 = scmp.eq.s32.totalorder %s205, 0
      %s208 = sadd.s32 %s207, 1
      %s209 = scalar_select %p206, %s207, %s208
      %p212 = pneg %p206
      %p213 = scmp.eq.s32.totalorder %s20, 1
      %p214 = por %p212, %p213
      %p215 = scmp.ne.s32.totalorder %s207, %s210
      %p216 = scmp.eq.s32.totalorder %s20, 0
      %p217 = por %p215, %p216
      %p218 = scmp.ne.s32.totalorder %s207, %s210
      %p219 = scmp.eq.s32.totalorder %s25, 1
      %p220 = por %p218, %p219
      %p221 = scmp.ne.s32.totalorder %s210, %s211
      %p222 = scmp.eq.s32.totalorder %s25, 0
      %p223 = por %p221, %p222
      %p224 = scmp.ne.s32.totalorder %s210, %s211
      %p225 = scmp.eq.s32.totalorder %s26, 1
      %p226 = por %p224, %p225
      %p228 = scmp.ne.s32.totalorder %s211, %s227
      %p229 = scmp.eq.s32.totalorder %s26, 0
      %p230 = por %p228, %p229
      %s231 = ssub.s32 %s20, %s27
      %p232 = scmp.eq.s32.totalorder %s231, 0
      %s234 = sadd.s32 %s233, 1
      %s235 = scalar_select %p232, %s233, %s234
      %p238 = pneg %p232
      %p239 = scmp.eq.s32.totalorder %s20, 1
      %p240 = por %p238, %p239
      %p241 = scmp.ne.s32.totalorder %s233, %s236
      %p242 = scmp.eq.s32.totalorder %s20, 0
      %p243 = por %p241, %p242
      %p244 = scmp.ne.s32.totalorder %s233, %s236
      %p245 = scmp.eq.s32.totalorder %s25, 1
      %p246 = por %p244, %p245
      %p247 = scmp.ne.s32.totalorder %s236, %s237
      %p248 = scmp.eq.s32.totalorder %s25, 0
      %p249 = por %p247, %p248
      %p250 = scmp.ne.s32.totalorder %s236, %s237
      %p251 = scmp.eq.s32.totalorder %s26, 1
      %p252 = por %p250, %p251
      %p254 = scmp.ne.s32.totalorder %s237, %s253
      %p255 = scmp.eq.s32.totalorder %s26, 0
      %p256 = por %p254, %p255
      %p257 = scmp.le.s32.totalorder 1, %s20
      %p258 = scmp.lt.s32.totalorder %s20, 3
      %p259 = pnand %p257, %p258
      %p260 = pneg %p259
      // Predicated region
      $region9: #{ensemble_forward.1} parent=5 // pred_check
        _
      $region10: #{ensemble_forward.1} parent=5 // pred_check_branch
        %262 = sbr.rel (%p259) target = $region12
      $region11: #{ensemble_forward.1} parent=5 // pred_region
        %s263 = ssub.s32 %s20, 1
        // Predicated region
        $region13: #{ensemble_forward.1} parent=11 // pred_check
          %p264 = pneg %p41
        $region14: #{ensemble_forward.1} parent=11 // pred_check_branch
          %266 = sbr.rel (%p264) target = $region16
        $region15: #{ensemble_forward.1} parent=11 // pred_region
          _
        $region16: #{ensemble_forward.1} parent=11 // pred_fallthru
          _
      $region12: #{ensemble_forward.1} parent=5 // pred_fallthru
        _
      %p267 = scmp.lt.s32.totalorder %s20, 2
      // Predicated region
      $region17: #{ensemble_forward.1} parent=5 // pred_check
        %p268 = pneg %p267
      $region18: #{ensemble_forward.1} parent=5 // pred_check_branch
        %270 = sbr.rel (%p268) target = $region20
      $region19: #{ensemble_forward.1} parent=5 // pred_region
        // Predicated region
        $region21: #{ensemble_forward.1} parent=19 // pred_check
          %p271 = pneg %p61
        $region22: #{ensemble_forward.1} parent=19 // pred_check_branch
          %273 = sbr.rel (%p271) target = $region24
        $region23: #{ensemble_forward.1} parent=19 // pred_region
          %s274 = sand.u32 %s51, 1
          %s275 = scalar_lea.sflag [#allocation3], %s274
          %s276 = sand.u32 %s51, 1
          %s277 = smul.addr %s276, 64
          %s278 = scalar_lea.vmem [#allocation2], %s277
          %s280 = ssub.s32 1024, 1024
          %281 = vsyncadd %s275, %s280
          %s282 = smul.addr %s20, 16
          %s283 = smul.addr %s282, 64
          %s284 = scalar_lea.hbm %s1, %s283
          %s285 = sshll.u32 %s278, 4
          %s286 = int_to_ptr.vmem [resolvable:$true] %s285
          %291 = dma.hbm_to_vmem [thread:$0]  %s284, 1024, %s286, %s275, 64, 64, 4
        $region24: #{ensemble_forward.1} parent=19 // pred_fallthru
          _
        // Predicated region
        $region25: #{ensemble_forward.1} parent=19 // pred_check
          %p292 = pneg %p87
        $region26: #{ensemble_forward.1} parent=19 // pred_check_branch
          %294 = sbr.rel (%p292) target = $region28
        $region27: #{ensemble_forward.1} parent=19 // pred_region
          %s295 = sand.u32 %s77, 1
          %s296 = scalar_lea.sflag [#allocation5], %s295
          %s297 = sand.u32 %s77, 1
          %s298 = smul.addr %s297, 64
          %s299 = scalar_lea.vmem [#allocation4], %s298
          %s301 = ssub.s32 1024, 1024
          %302 = vsyncadd %s296, %s301
          %s303 = smul.addr %s20, 16
          %s304 = smul.addr %s303, 64
          %s305 = scalar_lea.hbm %s2, %s304
          %s306 = sshll.u32 %s299, 4
          %s307 = int_to_ptr.vmem [resolvable:$true] %s306
          %312 = dma.hbm_to_vmem [thread:$0]  %s305, 1024, %s307, %s296, 64, 64, 4
        $region28: #{ensemble_forward.1} parent=19 // pred_fallthru
          _
        // Predicated region
        $region29: #{ensemble_forward.1} parent=19 // pred_check
          %p313 = pneg %p113
        $region30: #{ensemble_forward.1} parent=19 // pred_check_branch
          %315 = sbr.rel (%p313) target = $region32
        $region31: #{ensemble_forward.1} parent=19 // pred_region
          %p316 = scmp.lt.s32.totalorder %s20, 1
          %s317 = scalar_select %p316, %s20, 1
          %s318 = smul.addr %s317, 32
          %s319 = smul.addr %s318, 4
          %s320 = scalar_lea.vmem %s3, %s319
        $region32: #{ensemble_forward.1} parent=19 // pred_fallthru
          _
        // Predicated region
        $region33: #{ensemble_forward.1} parent=19 // pred_check
          %p321 = pneg %p139
        $region34: #{ensemble_forward.1} parent=19 // pred_check_branch
          %323 = sbr.rel (%p321) target = $region36
        $region35: #{ensemble_forward.1} parent=19 // pred_region
          %p324 = scmp.lt.s32.totalorder %s20, 1
          %s325 = scalar_select %p324, %s20, 1
          %s326 = smul.addr %s325, 2
          %s327 = scalar_lea.vmem %s4, %s326
        $region36: #{ensemble_forward.1} parent=19 // pred_fallthru
          _
        // Predicated region
        $region37: #{ensemble_forward.1} parent=19 // pred_check
          %p328 = pneg %p165
        $region38: #{ensemble_forward.1} parent=19 // pred_check_branch
          %330 = sbr.rel (%p328) target = $region40
        $region39: #{ensemble_forward.1} parent=19 // pred_region
          %p331 = scmp.lt.s32.totalorder %s20, 1
          %s332 = scalar_select %p331, %s20, 1
          %s333 = smul.addr %s332, 2
          %s334 = scalar_lea.vmem %s5, %s333
        $region40: #{ensemble_forward.1} parent=19 // pred_fallthru
          _
        // Predicated region
        $region41: #{ensemble_forward.1} parent=19 // pred_check
          %p335 = pneg %p191
        $region42: #{ensemble_forward.1} parent=19 // pred_check_branch
          %337 = sbr.rel (%p335) target = $region44
        $region43: #{ensemble_forward.1} parent=19 // pred_region
          %p338 = scmp.lt.s32.totalorder %s20, 1
          %s339 = scalar_select %p338, %s20, 1
          %s340 = smul.addr %s339, 2
          %s341 = scalar_lea.vmem %s6, %s340
        $region44: #{ensemble_forward.1} parent=19 // pred_fallthru
          _
        // Predicated region
        $region45: #{ensemble_forward.1} parent=19 // pred_check
          %p342 = pneg %p217
        $region46: #{ensemble_forward.1} parent=19 // pred_check_branch
          %344 = sbr.rel (%p342) target = $region48
        $region47: #{ensemble_forward.1} parent=19 // pred_region
          %p345 = scmp.lt.s32.totalorder %s20, 1
          %s346 = scalar_select %p345, %s20, 1
          %s347 = smul.addr %s346, 8
          %s348 = scalar_lea.vmem %s7, %s347
        $region48: #{ensemble_forward.1} parent=19 // pred_fallthru
          _
      $region20: #{ensemble_forward.1} parent=5 // pred_fallthru
        _
      %p349 = scmp.le.s32.totalorder 1, %s20
      %p350 = scmp.lt.s32.totalorder %s20, 3
      %p351 = pnand %p349, %p350
      %p352 = pneg %p351
      // Predicated region
      $region49: #{ensemble_forward.1} parent=5 // pred_check
        _
      $region50: #{ensemble_forward.1} parent=5 // pred_check_branch
        %354 = sbr.rel (%p351) target = $region52
      $region51: #{ensemble_forward.1} parent=5 // pred_region
        %s355 = ssub.s32 %s20, 1
        %s356 = sand.u32 %s54, 1
        %s357 = scalar_lea.sflag [#allocation3], %s356
        %s358 = sand.u32 %s54, 1
        %s359 = smul.addr %s358, 64
        %s360 = scalar_lea.vmem [#allocation2], %s359
        // Predicated region
        $region53: #{ensemble_forward.1} parent=51 // pred_check
          %p361 = pneg %p67
        $region54: #{ensemble_forward.1} parent=51 // pred_check_branch
          %363 = sbr.rel (%p361) target = $region56
        $region55: #{ensemble_forward.1} parent=51 // pred_region
          %364 = dma.done %s357, 1024
        $region56: #{ensemble_forward.1} parent=51 // pred_fallthru
          _
        %s365 = sand.u32 %s80, 1
        %s366 = scalar_lea.sflag [#allocation5], %s365
        %s367 = sand.u32 %s80, 1
        %s368 = smul.addr %s367, 64
        %s369 = scalar_lea.vmem [#allocation4], %s368
        // Predicated region
        $region57: #{ensemble_forward.1} parent=51 // pred_check
          %p370 = pneg %p93
        $region58: #{ensemble_forward.1} parent=51 // pred_check_branch
          %372 = sbr.rel (%p370) target = $region60
        $region59: #{ensemble_forward.1} parent=51 // pred_region
          %373 = dma.done %s366, 1024
        $region60: #{ensemble_forward.1} parent=51 // pred_fallthru
          _
        %p374 = pneg %p41
        %p375 = pneg %p38
        %s376 = sand.u32 %s54, 1
        %s377 = scalar_lea.sflag [#allocation3], %s376
        %s378 = sand.u32 %s54, 1
        %s379 = smul.addr %s378, 64
        %s380 = scalar_lea.vmem [#allocation2], %s379
        %p381 = pneg %p67
        %p382 = pneg %p64
        %s383 = sand.u32 %s80, 1
        %s384 = scalar_lea.sflag [#allocation5], %s383
        %s385 = sand.u32 %s80, 1
        %s386 = smul.addr %s385, 64
        %s387 = scalar_lea.vmem [#allocation4], %s386
        %p388 = pneg %p93
        %p389 = pneg %p90
        %p390 = scmp.lt.s32.totalorder %s25, 1
        %s391 = scalar_select %p390, %s25, 1
        %s392 = smul.addr %s391, 32
        %s393 = smul.addr %s392, 4
        %s394 = scalar_lea.vmem %s3, %s393
        %p395 = pneg %p119
        %p396 = pneg %p116
        %p397 = scmp.lt.s32.totalorder %s25, 1
        %s398 = scalar_select %p397, %s25, 1
        %s399 = smul.addr %s398, 2
        %s400 = scalar_lea.vmem %s4, %s399
        %p401 = pneg %p145
        %p402 = pneg %p142
        %p403 = scmp.lt.s32.totalorder %s25, 1
        %s404 = scalar_select %p403, %s25, 1
        %s405 = smul.addr %s404, 2
        %s406 = scalar_lea.vmem %s5, %s405
        %p407 = pneg %p171
        %p408 = pneg %p168
        %p409 = scmp.lt.s32.totalorder %s25, 1
        %s410 = scalar_select %p409, %s25, 1
        %s411 = smul.addr %s410, 2
        %s412 = scalar_lea.vmem %s6, %s411
        %p413 = pneg %p197
        %p414 = pneg %p194
        %p415 = scmp.lt.s32.totalorder %s25, 1
        %s416 = scalar_select %p415, %s25, 1
        %s417 = smul.addr %s416, 8
        %s418 = scalar_lea.vmem %s7, %s417
        %p419 = pneg %p223
        %p420 = pneg %p220
        %p421 = pneg %p249
        %p422 = pneg %p246
        %p423 = scmp.lt.s32.totalorder %s25, 1
        %s424 = scalar_select %p423, %s25, 1
        %s425 = smul.addr %s424, 8
        %s426 = scalar_lea.vmem %s8, %s425
        %p427 = scmp.lt.s32.totalorder %s25, 1
        %s428 = scalar_select %p427, %s25, 1
        %s429 = smul.addr %s428, 32
        %s430 = smul.addr %s429, 4
        %s431 = scalar_lea.vmem %s3, %s430
        %p432 = scmp.lt.s32.totalorder %s25, 1
        %s433 = scalar_select %p432, %s25, 1
        %s434 = smul.addr %s433, 2
        %s435 = scalar_lea.vmem %s4, %s434
        %p436 = scmp.lt.s32.totalorder %s25, 1
        %s437 = scalar_select %p436, %s25, 1
        %s438 = smul.addr %s437, 2
        %s439 = scalar_lea.vmem %s5, %s438
        %p440 = scmp.lt.s32.totalorder %s25, 1
        %s441 = scalar_select %p440, %s25, 1
        %s442 = smul.addr %s441, 2
        %s443 = scalar_lea.vmem %s6, %s442
        %p444 = scmp.lt.s32.totalorder %s25, 1
        %s445 = scalar_select %p444, %s25, 1
        %s446 = smul.addr %s445, 8
        %s447 = scalar_lea.vmem %s7, %s446
        %p448 = scmp.lt.s32.totalorder %s25, 1
        %s449 = scalar_select %p448, %s25, 1
        %s450 = smul.addr %s449, 8
        %s451 = scalar_lea.vmem %s8, %s450
        %v453 = vld [vmem:[%s0] sm:$0xff]
        %v454 = vpack.c.bf16 %v453, %v453
        %v455 = vld [vmem:[%s435] sm:$0x3]
        %v456 = vld [vmem:[%s360] sm:$0xf]
        %v457 = vld [vmem:[%s360 + $0x4] sm:$0xf]
        %v458 = vld [vmem:[%s360 + $0x8] sm:$0xf]
        %v459 = vld [vmem:[%s360 + $0xc] sm:$0xf]
        %v460 = vld [vmem:[%s360 + $0x10] sm:$0xf]
        %v461 = vld [vmem:[%s360 + $0x14] sm:$0xf]
        %v462 = vld [vmem:[%s360 + $0x18] sm:$0xf]
        %v463 = vld [vmem:[%s360 + $0x1c] sm:$0xf]
        %v464 = vld [vmem:[%s360 + $0x20] sm:$0xf]
        %v465 = vld [vmem:[%s360 + $0x24] sm:$0xf]
        %v466 = vld [vmem:[%s360 + $0x28] sm:$0xf]
        %v467 = vld [vmem:[%s360 + $0x2c] sm:$0xf]
        %v468 = vld [vmem:[%s360 + $0x30] sm:$0xf]
        %v469 = vld [vmem:[%s360 + $0x34] sm:$0xf]
        %v470 = vld [vmem:[%s360 + $0x38] sm:$0xf]
        %v471 = vld [vmem:[%s360 + $0x3c] sm:$0xf]
        %v472 = vlaneseq
        %v473 = vshrl.u32 %v472, 7
        %v474 = vsub.s32 0, %v473
        %v475 = vrot.slane %v455, %v474
        %v492 = vunpack.c.l.b16 %v456
        %v493 = vunpack.c.l.b16 %v457
        %v494 = vunpack.c.l.b16 %v458
        %v495 = vunpack.c.l.b16 %v459
        %v496 = vunpack.c.l.b16 %v460
        %v497 = vunpack.c.l.b16 %v461
        %v498 = vunpack.c.l.b16 %v462
        %v499 = vunpack.c.l.b16 %v463
        %v500 = vunpack.c.l.b16 %v464
        %v501 = vunpack.c.l.b16 %v465
        %v502 = vunpack.c.l.b16 %v466
        %v503 = vunpack.c.l.b16 %v467
        %v504 = vunpack.c.l.b16 %v468
        %v505 = vunpack.c.l.b16 %v469
        %v506 = vunpack.c.l.b16 %v470
        %v507 = vunpack.c.l.b16 %v471
        %v508 = vpack.c.b16 %v493, %v492
        %v509 = vpack.c.b16 %v495, %v494
        %v510 = vpack.c.b16 %v497, %v496
        %v511 = vpack.c.b16 %v499, %v498
        %v512 = vpack.c.b16 %v501, %v500
        %v513 = vpack.c.b16 %v503, %v502
        %v514 = vpack.c.b16 %v505, %v504
        %v515 = vpack.c.b16 %v507, %v506
        %524 = vmatprep.subr.bf16.mxu0 0
        %525 = vmatpush1.bf16.msra.mxu0 %v508
        %526 = vmatprep.subr.bf16.mxu0 0
        %527 = vmatpush1.bf16.msra.mxu0 %v509
        %528 = vmatprep.subr.bf16.mxu0 0
        %529 = vmatpush1.bf16.msra.mxu0 %v510
        %530 = vmatprep.subr.bf16.mxu0 0
        %531 = vmatpush1.bf16.msra.mxu0 %v511
        %532 = vmatprep.subr.bf16.mxu0 0
        %533 = vmatpush1.bf16.msra.mxu0 %v512
        %534 = vmatprep.subr.bf16.mxu0 0
        %535 = vmatpush1.bf16.msra.mxu0 %v513
        %536 = vmatprep.subr.bf16.mxu0 0
        %537 = vmatpush1.bf16.msra.mxu0 %v514
        %538 = vmatprep.subr.bf16.mxu0 0
        %539 = vmatpush1.bf16.msra.mxu0 %v515
        %540 = vmatprep.subr.bf16.mxu0 0
        %541 = vmatpush1.bf16.msra.mxu0 0
        %542 = vmatprep.subr.bf16.mxu0 0
        %543 = vmatpush1.bf16.msra.mxu0 0
        %544 = vmatprep.subr.bf16.mxu0 0
        %545 = vmatpush1.bf16.msra.mxu0 0
        %546 = vmatprep.subr.bf16.mxu0 0
        %547 = vmatpush1.bf16.msra.mxu0 0
        %548 = vmatprep.subr.bf16.mxu0 0
        %549 = vmatpush1.bf16.msra.mxu0 0
        %550 = vmatprep.subr.bf16.mxu0 0
        %551 = vmatpush1.bf16.msra.mxu0 0
        %552 = vmatprep.subr.bf16.mxu0 0
        %553 = vmatpush1.bf16.msra.mxu0 0
        %554 = vmatprep.subr.bf16.mxu0 0
        %555 = vmatpush1.bf16.msra.mxu0 0
        %556 = vmatprep.mubr.bf16.mxu0 0
        %557 = vmatmul.mubr.bf16.gmra.mrb[0].mxu0 %v454
        %v558 = vpop.f32.mrb[0].mxu0
        %v559 = vadd.f32 %v475, %v558
        %v560 = vpop.f32.mrb[0].mxu0
        %v561 = vpop.f32.mrb[0].mxu0
        %v562 = vpop.f32.mrb[0].mxu0
        %563 = vdwg.mxu0
        %v564 = vmax.f32 %v559, 0.0
        %v565 = vpack.c.bf16 %v564, %v564
        %v566 = vld [vmem:[%s369] sm:$0xf]
        %v567 = vld [vmem:[%s369 + $0x4] sm:$0xf]
        %v568 = vld [vmem:[%s369 + $0x8] sm:$0xf]
        %v569 = vld [vmem:[%s369 + $0xc] sm:$0xf]
        %v570 = vld [vmem:[%s369 + $0x10] sm:$0xf]
        %v571 = vld [vmem:[%s369 + $0x14] sm:$0xf]
        %v572 = vld [vmem:[%s369 + $0x18] sm:$0xf]
        %v573 = vld [vmem:[%s369 + $0x1c] sm:$0xf]
        %v574 = vld [vmem:[%s369 + $0x20] sm:$0xf]
        %v575 = vld [vmem:[%s369 + $0x24] sm:$0xf]
        %v576 = vld [vmem:[%s369 + $0x28] sm:$0xf]
        %v577 = vld [vmem:[%s369 + $0x2c] sm:$0xf]
        %v578 = vld [vmem:[%s369 + $0x30] sm:$0xf]
        %v579 = vld [vmem:[%s369 + $0x34] sm:$0xf]
        %v580 = vld [vmem:[%s369 + $0x38] sm:$0xf]
        %v581 = vld [vmem:[%s369 + $0x3c] sm:$0xf]
        %v582 = vlaneseq
        %v583 = vshrl.u32 %v582, 7
        %v584 = vsub.s32 1, %v583
        %v585 = vrot.slane %v455, %v584
        %v602 = vunpack.c.l.b16 %v566
        %v603 = vunpack.c.l.b16 %v567
        %v604 = vunpack.c.l.b16 %v568
        %v605 = vunpack.c.l.b16 %v569
        %v606 = vunpack.c.l.b16 %v570
        %v607 = vunpack.c.l.b16 %v571
        %v608 = vunpack.c.l.b16 %v572
        %v609 = vunpack.c.l.b16 %v573
        %v610 = vunpack.c.l.b16 %v574
        %v611 = vunpack.c.l.b16 %v575
        %v612 = vunpack.c.l.b16 %v576
        %v613 = vunpack.c.l.b16 %v577
        %v614 = vunpack.c.l.b16 %v578
        %v615 = vunpack.c.l.b16 %v579
        %v616 = vunpack.c.l.b16 %v580
        %v617 = vunpack.c.l.b16 %v581
        %v618 = vpack.c.b16 %v603, %v602
        %v619 = vpack.c.b16 %v605, %v604
        %v620 = vpack.c.b16 %v607, %v606
        %v621 = vpack.c.b16 %v609, %v608
        %v622 = vpack.c.b16 %v611, %v610
        %v623 = vpack.c.b16 %v613, %v612
        %v624 = vpack.c.b16 %v615, %v614
        %v625 = vpack.c.b16 %v617, %v616
        %634 = vmatprep.subr.bf16.mxu0 0
        %635 = vmatpush1.bf16.msra.mxu0 %v618
        %636 = vmatprep.subr.bf16.mxu0 0
        %637 = vmatpush1.bf16.msra.mxu0 %v619
        %638 = vmatprep.subr.bf16.mxu0 0
        %639 = vmatpush1.bf16.msra.mxu0 %v620
        %640 = vmatprep.subr.bf16.mxu0 0
        %641 = vmatpush1.bf16.msra.mxu0 %v621
        %642 = vmatprep.subr.bf16.mxu0 0
        %643 = vmatpush1.bf16.msra.mxu0 %v622
        %644 = vmatprep.subr.bf16.mxu0 0
        %645 = vmatpush1.bf16.msra.mxu0 %v623
        %646 = vmatprep.subr.bf16.mxu0 0
        %647 = vmatpush1.bf16.msra.mxu0 %v624
        %648 = vmatprep.subr.bf16.mxu0 0
        %649 = vmatpush1.bf16.msra.mxu0 %v625
        %650 = vmatprep.subr.bf16.mxu0 0
        %651 = vmatpush1.bf16.msra.mxu0 0
        %652 = vmatprep.subr.bf16.mxu0 0
        %653 = vmatpush1.bf16.msra.mxu0 0
        %654 = vmatprep.subr.bf16.mxu0 0
        %655 = vmatpush1.bf16.msra.mxu0 0
        %656 = vmatprep.subr.bf16.mxu0 0
        %657 = vmatpush1.bf16.msra.mxu0 0
        %658 = vmatprep.subr.bf16.mxu0 0
        %659 = vmatpush1.bf16.msra.mxu0 0
        %660 = vmatprep.subr.bf16.mxu0 0
        %661 = vmatpush1.bf16.msra.mxu0 0
        %662 = vmatprep.subr.bf16.mxu0 0
        %663 = vmatpush1.bf16.msra.mxu0 0
        %664 = vmatprep.subr.bf16.mxu0 0
        %665 = vmatpush1.bf16.msra.mxu0 0
        %666 = vmatprep.mubr.bf16.mxu0 0
        %667 = vmatmul.mubr.bf16.gmra.mrb[0].mxu0 %v565
        %v668 = vpop.f32.mrb[0].mxu0
        %v669 = vadd.f32 %v585, %v668
        %v670 = vpop.f32.mrb[0].mxu0
        %v671 = vpop.f32.mrb[0].mxu0
        %v672 = vpop.f32.mrb[0].mxu0
        %673 = vdwg.mxu0
        %v674 = vmax.f32 %v669, 0.0
        %v675 = vpack.c.bf16 %v674, %v674
        %v676 = vld [vmem:[%s431] sm:$0xff]
        %v677 = vld [vmem:[%s431 + $0x8] sm:$0xff]
        %v678 = vld [vmem:[%s431 + $0x10] sm:$0xff]
        %v679 = vld [vmem:[%s431 + $0x18] sm:$0xff]
        %v680 = vld [vmem:[%s431 + $0x20] sm:$0xff]
        %v681 = vld [vmem:[%s431 + $0x28] sm:$0xff]
        %v682 = vld [vmem:[%s431 + $0x30] sm:$0xff]
        %v683 = vld [vmem:[%s431 + $0x38] sm:$0xff]
        %v684 = vld [vmem:[%s431 + $0x40] sm:$0xff]
        %v685 = vld [vmem:[%s431 + $0x48] sm:$0xff]
        %v686 = vld [vmem:[%s431 + $0x50] sm:$0xff]
        %v687 = vld [vmem:[%s431 + $0x58] sm:$0xff]
        %v688 = vld [vmem:[%s431 + $0x60] sm:$0xff]
        %v689 = vld [vmem:[%s431 + $0x68] sm:$0xff]
        %v690 = vld [vmem:[%s431 + $0x70] sm:$0xff]
        %v691 = vld [vmem:[%s431 + $0x78] sm:$0xff]
        %v692 = vld [vmem:[%s439] sm:$0x3]
        %v694 = vlaneseq
        %v695 = vshrl.u32 %v694, 7
        %v696 = vsub.s32 0, %v695
        %v697 = vrot.slane %v692, %v696
        %v698 = vlaneseq
        %v699 = vshrl.u32 %v698, 7
        %v700 = vsub.s32 1, %v699
        %v701 = vrot.slane %v692, %v700
        %v720 = vunpack.c.l.b16 %v676
        %v721 = vunpack.c.h.b16 %v676
        %v722 = vunpack.c.l.b16 %v677
        %v723 = vunpack.c.h.b16 %v677
        %v724 = vunpack.c.l.b16 %v678
        %v725 = vunpack.c.h.b16 %v678
        %v726 = vunpack.c.l.b16 %v679
        %v727 = vunpack.c.h.b16 %v679
        %v728 = vunpack.c.l.b16 %v680
        %v729 = vunpack.c.h.b16 %v680
        %v730 = vunpack.c.l.b16 %v681
        %v731 = vunpack.c.h.b16 %v681
        %v732 = vunpack.c.l.b16 %v682
        %v733 = vunpack.c.h.b16 %v682
        %v734 = vunpack.c.l.b16 %v683
        %v735 = vunpack.c.h.b16 %v683
        %v736 = vunpack.c.l.b16 %v684
        %v737 = vunpack.c.h.b16 %v684
        %v738 = vunpack.c.l.b16 %v685
        %v739 = vunpack.c.h.b16 %v685
        %v740 = vunpack.c.l.b16 %v686
        %v741 = vunpack.c.h.b16 %v686
        %v742 = vunpack.c.l.b16 %v687
        %v743 = vunpack.c.h.b16 %v687
        %v744 = vunpack.c.l.b16 %v688
        %v745 = vunpack.c.h.b16 %v688
        %v746 = vunpack.c.l.b16 %v689
        %v747 = vunpack.c.h.b16 %v689
        %v748 = vunpack.c.l.b16 %v690
        %v749 = vunpack.c.h.b16 %v690
        %v750 = vunpack.c.l.b16 %v691
        %v751 = vunpack.c.h.b16 %v691
        %v752 = vpack.c.b16 %v722, %v720
        %v753 = vpack.c.b16 %v723, %v721
        %v754 = vpack.c.b16 %v726, %v724
        %v755 = vpack.c.b16 %v727, %v725
        %v756 = vpack.c.b16 %v730, %v728
        %v757 = vpack.c.b16 %v731, %v729
        %v758 = vpack.c.b16 %v734, %v732
        %v759 = vpack.c.b16 %v735, %v733
        %v760 = vpack.c.b16 %v738, %v736
        %v761 = vpack.c.b16 %v739, %v737
        %v762 = vpack.c.b16 %v742, %v740
        %v763 = vpack.c.b16 %v743, %v741
        %v764 = vpack.c.b16 %v746, %v744
        %v765 = vpack.c.b16 %v747, %v745
        %v766 = vpack.c.b16 %v750, %v748
        %v767 = vpack.c.b16 %v751, %v749
        %784 = vmatprep.subr.bf16.mxu0 %v753
        %785 = vmatpush1.bf16.msra.mxu0 %v752
        %786 = vmatprep.subr.bf16.mxu0 %v755
        %787 = vmatpush1.bf16.msra.mxu0 %v754
        %788 = vmatprep.subr.bf16.mxu0 %v757
        %789 = vmatpush1.bf16.msra.mxu0 %v756
        %790 = vmatprep.subr.bf16.mxu0 %v759
        %791 = vmatpush1.bf16.msra.mxu0 %v758
        %792 = vmatprep.subr.bf16.mxu0 %v761
        %793 = vmatpush1.bf16.msra.mxu0 %v760
        %794 = vmatprep.subr.bf16.mxu0 %v763
        %795 = vmatpush1.bf16.msra.mxu0 %v762
        %796 = vmatprep.subr.bf16.mxu0 %v765
        %797 = vmatpush1.bf16.msra.mxu0 %v764
        %798 = vmatprep.subr.bf16.mxu0 %v767
        %799 = vmatpush1.bf16.msra.mxu0 %v766
        %800 = vmatprep.subr.bf16.mxu0 0
        %801 = vmatpush1.bf16.msra.mxu0 0
        %802 = vmatprep.subr.bf16.mxu0 0
        %803 = vmatpush1.bf16.msra.mxu0 0
        %804 = vmatprep.subr.bf16.mxu0 0
        %805 = vmatpush1.bf16.msra.mxu0 0
        %806 = vmatprep.subr.bf16.mxu0 0
        %807 = vmatpush1.bf16.msra.mxu0 0
        %808 = vmatprep.subr.bf16.mxu0 0
        %809 = vmatpush1.bf16.msra.mxu0 0
        %810 = vmatprep.subr.bf16.mxu0 0
        %811 = vmatpush1.bf16.msra.mxu0 0
        %812 = vmatprep.subr.bf16.mxu0 0
        %813 = vmatpush1.bf16.msra.mxu0 0
        %814 = vmatprep.subr.bf16.mxu0 0
        %815 = vmatpush1.bf16.msra.mxu0 0
        %816 = vmatprep.mubr.bf16.mxu0 0
        %817 = vmatmul.mubr.bf16.gmra.mrb[0].mxu0 %v675
        %v818 = vpop.f32.mrb[0].mxu0
        %v819 = vadd.f32 %v697, %v818
        %v820 = vpop.f32.mrb[0].mxu0
        %v821 = vadd.f32 %v701, %v820
        %v822 = vpop.f32.mrb[0].mxu0
        %v823 = vpop.f32.mrb[0].mxu0
        %824 = vdwg.mxu0
        %v825 = vld [vmem:[%s443] sm:$0x3]
        %v826 = vlaneseq
        %v827 = vshrl.u32 %v826, 7
        %v828 = vsub.s32 0, %v827
        %v829 = vrot.slane %v825, %v828
        %v830 = vsub.f32 %v829, %v821
        %v831 = vmax.f32 %v830, 0.0
        %vm832 = vcmp.ne.f32.partialorder %v830, %v830
        %v833 = vadd.f32 %v830, 0.0
        %v834 = vand.u32 2147483647, %v830
        %v835 = vsub.f32 0.0, %v834
        %v836 = vmul.f32 %v835, 1.442695
        %v837 = vpow.pop %v836
        %v838 = vadd.f32 %v837, 1.0
        %v839 = vlog2.pop %v838
        %v840 = vmul.f32 %v839, 0.6931472
        %v841 = vmul.f32 -0.5, %v837
        %v842 = vadd.f32 %v841, 1.0
        %v843 = vmul.f32 %v842, %v837
        %v844 = vand.u32 2147483647, %v837
        %vm845 = vcmp.lt.f32.partialorder %v844, 0.0004427343
        %v846 = vsel %vm845, %v843, %v840
        %v847 = vadd.f32 %v831, %v846
        %v848 = vsel %vm832, %v833, %v847
        %v849 = vsub.f32 %v829, %v848
        %v850 = vlaneseq
        %v851 = vshrl.u32 %v850, 7
        %v852 = vsub.s32 1, %v851
        %v853 = vrot.slane %v825, %v852
        %v854 = vsub.f32 %v849, %v853
        %v855 = vmax.f32 %v854, 0.0
        %vm856 = vcmp.ne.f32.partialorder %v854, %v854
        %v857 = vadd.f32 %v854, 0.0
        %v858 = vand.u32 2147483647, %v854
        %v859 = vsub.f32 0.0, %v858
        %v860 = vmul.f32 %v859, 1.442695
        %v861 = vpow.pop %v860
        %v862 = vadd.f32 %v861, 1.0
        %v863 = vlog2.pop %v862
        %v864 = vmul.f32 %v863, 0.6931472
        %v865 = vmul.f32 -0.5, %v861
        %v866 = vadd.f32 %v865, 1.0
        %v867 = vmul.f32 %v866, %v861
        %v868 = vand.u32 2147483647, %v861
        %vm869 = vcmp.lt.f32.partialorder %v868, 0.0004427343
        %v870 = vsel %vm869, %v867, %v864
        %v871 = vadd.f32 %v855, %v870
        %v872 = vsel %vm856, %v857, %v871
        %v873 = vadd.f32 %v853, %v872
        %v874 = vmul.f32 %v873, 1.442695
        %v875 = vpow.pop %v874
        %v876 = vld [vmem:[%s447] sm:$0xff]
        %v877 = vmul.f32 %v875, %v876
        %v878 = vadd.f32 %v819, %v877
        %879 = vst [vmem:[%s451] sm:$0xff] %v878
        %p880 = scmp.lt.s32.totalorder %s25, 1
        %s881 = scalar_select %p880, %s25, 1
        %s882 = smul.addr %s881, 8
        %s883 = scalar_lea.vmem %s8, %s882
        // Predicated region
        $region61: #{ensemble_forward.1} parent=51 // pred_check
          %p884 = pneg %p246
        $region62: #{ensemble_forward.1} parent=51 // pred_check_branch
          %886 = sbr.rel (%p884) target = $region64
        $region63: #{ensemble_forward.1} parent=51 // pred_region
          _
        $region64: #{ensemble_forward.1} parent=51 // pred_fallthru
          _
      $region52: #{ensemble_forward.1} parent=5 // pred_fallthru
        _
      %p887 = scmp.le.s32.totalorder 2, %s20
      // Predicated region
      $region65: #{ensemble_forward.1} parent=5 // pred_check
        %p888 = pneg %p887
      $region66: #{ensemble_forward.1} parent=5 // pred_check_branch
        %890 = sbr.rel (%p888) target = $region68
      $region67: #{ensemble_forward.1} parent=5 // pred_region
        %s891 = ssub.s32 %s20, 2
        // Predicated region
        $region69: #{ensemble_forward.1} parent=67 // pred_check
          %p892 = pneg %p252
        $region70: #{ensemble_forward.1} parent=67 // pred_check_branch
          %894 = sbr.rel (%p892) target = $region72
        $region71: #{ensemble_forward.1} parent=67 // pred_region
          %p895 = scmp.lt.s32.totalorder %s26, 1
          %s896 = scalar_select %p895, %s26, 1
          %s897 = smul.addr %s896, 8
          %s898 = scalar_lea.vmem %s8, %s897
        $region72: #{ensemble_forward.1} parent=67 // pred_fallthru
          _
      $region68: #{ensemble_forward.1} parent=5 // pred_fallthru
        _
    $region6: #{ensemble_forward.1} parent=1 // loop_footer
      %s24 = sadd.s32 1, %s20
    $region7: #{ensemble_forward.1} parent=1 // loop_footer_branch
      %19 = sbr.rel target = $region3
    $region8: #{ensemble_forward.1} parent=1 // loop_exit
      _
    %899 = vsyncpa [#allocation3], 1
    %s900 = scalar_lea.sflag [#allocation3], 1
    %901 = vsyncpa %s900, 1
    %902 = vsyncpa [#allocation5], 1
    %s903 = scalar_lea.sflag [#allocation5], 1
    %904 = vsyncpa %s903, 1

</llo_original>
